<compile_context>
chip_gen: v6e
topology: v6e:2x2x1
jax: 0.10.0
libtpu: 0.0.40
codegen_flags: <defaults>
</compile_context>

<pallas_src>
import jax
import jax.numpy as jnp
from jax.experimental import pallas as pl
from jax.experimental.pallas import tpu as pltpu

_LANE = 128      # vreg lane width
_SUBLANE = 8     # f32 sublane count


def _round_up(x, m):
    return ((x + m - 1) // m) * m


def _mlp_kernel(a1_ref, a2_ref,            # SMEM scalars (PReLU slopes)
                z_ref, w1_ref, b1_ref,     # VMEM tiles
                w2_ref, b2_ref,
                w3_ref, b3_ref,
                out_ref):
    x = z_ref[...]                         # (TM, r_p), f32 or bf16
    a1 = a1_ref[0, 0]
    a2 = a2_ref[0, 0]

    # Linear(r, hdl) + PReLU. MXU matmul with f32 accumulation; elementwise
    # (bias add, where, scalar mul) stays f32 on the VPU.
    h1 = jnp.dot(x, w1_ref[...], preferred_element_type=jnp.float32) + b1_ref[...]
    h1 = jnp.where(h1 > 0, h1, a1 * h1)

    # Linear(hdl, hdl) + PReLU
    h2 = jnp.dot(h1.astype(w2_ref.dtype), w2_ref[...],
                 preferred_element_type=jnp.float32) + b2_ref[...]
    h2 = jnp.where(h2 > 0, h2, a2 * h2)

    # Linear(hdl, nout)
    out = jnp.dot(h2.astype(w3_ref.dtype), w3_ref[...],
                  preferred_element_type=jnp.float32) + b3_ref[...]
    out_ref[...] = out.astype(out_ref.dtype)


def rep_celeb_sethgr(z, params, *, tm_max=512, compute_dtype=jnp.float32):
    """Fused MLP forward. z: (B, r) float32. Returns (B, nout) float32."""
    w1, b1, w2, b2, w3, b3, a1, a2 = params
    B, r = z.shape
    hdl = w1.shape[1]
    nout = w3.shape[1]

    # ---- pad feature dims to lane multiples (128): full-width MXU pushes and
    #      a lane-dense (unmasked) output store. Zero padding keeps semantics:
    #      padded hidden columns are 0 and PReLU(0) = 0.
    r_p = _round_up(r, _LANE)
    hdl_p = _round_up(hdl, _LANE)
    nout_p = _round_up(nout, _LANE)

    def pad2(x, rows, cols):
        return jnp.pad(x, ((0, rows - x.shape[0]), (0, cols - x.shape[1])))

    w1p = pad2(w1, r_p, hdl_p).astype(compute_dtype)
    w2p = pad2(w2, hdl_p, hdl_p).astype(compute_dtype)
    w3p = pad2(w3, hdl_p, nout_p).astype(compute_dtype)
    b1p = pad2(b1, 1, hdl_p)                    # biases stay f32
    b2p = pad2(b2, 1, hdl_p)
    b3p = pad2(b3, 1, nout_p)

    # ---- batch tile: biggest tile (<= tm_max) that is a sublane multiple;
    #      pad B up to a multiple of the tile, slice the result afterwards.
    tm = max(_SUBLANE, min(tm_max, _round_up(B, _SUBLANE)))
    tm = _round_up(tm, _SUBLANE)
    b_p = _round_up(B, tm)
    zp = pad2(z, b_p, r_p).astype(compute_dtype)
    n_blocks = b_p // tm

    def weight_spec(shape):
        # Resident across the whole grid: index map is constant.
        return pl.BlockSpec(shape, lambda i: (0, 0))

    smem_spec = pl.BlockSpec((1, 1), lambda i: (0, 0),
                             memory_space=pltpu.MemorySpace.SMEM)

    out_padded = pl.pallas_call(
        _mlp_kernel,
        out_shape=jax.ShapeDtypeStruct((b_p, nout_p), jnp.float32),
        grid=(n_blocks,),
        in_specs=[
            smem_spec, smem_spec,                         # a1, a2 (scalars)
            pl.BlockSpec((tm, r_p), lambda i: (i, 0)),    # z (pipelined)
            weight_spec((r_p, hdl_p)), weight_spec((1, hdl_p)),    # w1, b1
            weight_spec((hdl_p, hdl_p)), weight_spec((1, hdl_p)),  # w2, b2
            weight_spec((hdl_p, nout_p)), weight_spec((1, nout_p)),  # w3, b3
        ],
        out_specs=pl.BlockSpec((tm, nout_p), lambda i: (i, 0)),
        compiler_params=pltpu.CompilerParams(
            dimension_semantics=("parallel",),   # megacore sharding on v7x
        ),
    )(a1, a2, zp, w1p, b1p, w2p, b2p, w3p, b3p)

    return out_padded[:B, :nout]


def init_params(key, r, hdl, nout):
    """Deterministic init mimicking nn.Linear default (uniform +/- 1/sqrt(fan_in)).

    Weights are stored transposed vs. PyTorch: (in_features, out_features).
    """
    ks = jax.random.split(key, 6)

    def lin(kw, kb, fan_in, fan_out):
        bound = 1.0 / jnp.sqrt(jnp.float32(fan_in))
        w = jax.random.uniform(kw, (fan_in, fan_out), jnp.float32, -bound, bound)
        b = jax.random.uniform(kb, (1, fan_out), jnp.float32, -bound, bound)
        return w, b

    w1, b1 = lin(ks[0], ks[1], r, hdl)
    w2, b2 = lin(ks[2], ks[3], hdl, hdl)
    w3, b3 = lin(ks[4], ks[5], hdl, nout)
    # PReLU default: scalar slope, init 0.25 (num_parameters=1).
    a1 = jnp.full((1, 1), 0.25, jnp.float32)
    a2 = jnp.full((1, 1), 0.25, jnp.float32)
    return (w1, b1, w2, b2, w3, b3, a1, a2)


def reference_forward(z, params, quant_dtype=None):
    """Pure-JAX reference. If quant_dtype is set, mirror the kernel's
    low-precision operand path (cast operands, accumulate in f32)."""
    w1, b1, w2, b2, w3, b3, a1, a2 = params

    def q(x):
        return x if quant_dtype is None else x.astype(quant_dtype).astype(jnp.float32)

    prelu = lambda x, a: jnp.where(x > 0, x, a[0, 0] * x)
    h = prelu(q(z) @ q(w1) + b1, a1)
    h = prelu(q(h) @ q(w2) + b2, a2)
    return q(h) @ q(w3) + b3


if __name__ == "__main__":
    # Shapes implied by the module: z is (batch, r); MLP r -> hdl -> hdl -> nout.
    B, r, hdl, nout = 8, 8, 32, 4

    key = jax.random.PRNGKey(0)
    k_z, k_p = jax.random.split(key)
    z = jax.random.normal(k_z, (B, r), jnp.float32)
    params = init_params(k_p, r, hdl, nout)

    # Small batch, f32 path (tight check vs reference).
    out = jax.block_until_ready(rep_celeb_sethgr(z, params))
    ref = jax.block_until_ready(reference_forward(z, params))
    assert out.shape == (B, nout)
    assert jnp.allclose(out, ref, atol=1e-5, rtol=1e-5), "f32 mismatch vs reference"

    # Larger, non-tile-aligned batch exercising the batch grid + padding path.
    B2 = 1000
    z2 = jax.random.normal(jax.random.PRNGKey(1), (B2, r), jnp.float32)
    out2 = jax.block_until_ready(rep_celeb_sethgr(z2, params, tm_max=512))
    ref2 = jax.block_until_ready(reference_forward(z2, params))
    assert out2.shape == (B2, nout)
    assert jnp.allclose(out2, ref2, atol=1e-4, rtol=1e-4), "gridded f32 mismatch"

    # bf16 operand path (v6e/v7x MXU) with f32 accumulation; compare against a
    # reference that quantizes operands the same way.
    out_bf16 = jax.block_until_ready(
        rep_celeb_sethgr(z2, params, tm_max=512, compute_dtype=jnp.bfloat16))
    ref_bf16 = jax.block_until_ready(
        reference_forward(z2, params, quant_dtype=jnp.bfloat16))
    assert jnp.allclose(out_bf16, ref_bf16, atol=1e-2, rtol=1e-2), "bf16 mismatch"

    print("KERNEL_OK")
</pallas_src>

<mosaic_0001>
module attributes {stable_mosaic.version = 11 : i64} {
  func.func @_mlp_kernel(%arg0: i32, %arg1: memref<1x1xf32, #tpu.memory_space<smem>>, %arg2: memref<1x1xf32, #tpu.memory_space<smem>>, %arg3: memref<8x128xf32, #tpu.memory_space<vmem>>, %arg4: memref<128x128xf32, #tpu.memory_space<vmem>>, %arg5: memref<1x128xf32, #tpu.memory_space<vmem>>, %arg6: memref<128x128xf32, #tpu.memory_space<vmem>>, %arg7: memref<1x128xf32, #tpu.memory_space<vmem>>, %arg8: memref<128x128xf32, #tpu.memory_space<vmem>>, %arg9: memref<1x128xf32, #tpu.memory_space<vmem>>, %arg10: memref<8x128xf32, #tpu.memory_space<vmem>>) attributes {dimension_semantics = [#tpu.dimension_semantics<parallel>], iteration_bounds = array<i64: 1>, scalar_prefetch = 0 : i64, scratch_operands = 0 : i64, tpu.core_type = #tpu.core_type<tc>, window_params = [{transform_indices = @transform_0, window_bounds = array<i64: 1, 1>}, {transform_indices = @transform_1, window_bounds = array<i64: 1, 1>}, {transform_indices = @transform_2, window_bounds = array<i64: 8, 128>}, {pipeline_mode = #tpu.pipeline_mode<synchronous>, transform_indices = @transform_3, window_bounds = array<i64: 128, 128>}, {pipeline_mode = #tpu.pipeline_mode<synchronous>, transform_indices = @transform_4, window_bounds = array<i64: 1, 128>}, {pipeline_mode = #tpu.pipeline_mode<synchronous>, transform_indices = @transform_5, window_bounds = array<i64: 128, 128>}, {pipeline_mode = #tpu.pipeline_mode<synchronous>, transform_indices = @transform_6, window_bounds = array<i64: 1, 128>}, {pipeline_mode = #tpu.pipeline_mode<synchronous>, transform_indices = @transform_7, window_bounds = array<i64: 128, 128>}, {pipeline_mode = #tpu.pipeline_mode<synchronous>, transform_indices = @transform_8, window_bounds = array<i64: 1, 128>}, {transform_indices = @transform_9, window_bounds = array<i64: 8, 128>}]} {
    %c0 = arith.constant 0 : index
    %c0_0 = arith.constant 0 : index
    %0 = vector.load %arg3[%c0, %c0_0] : memref<8x128xf32, #tpu.memory_space<vmem>>, vector<8x128xf32>
    %c0_1 = arith.constant 0 : index
    %c0_2 = arith.constant 0 : index
    %1 = memref.load %arg1[%c0_1, %c0_2] : memref<1x1xf32, #tpu.memory_space<smem>>
    %c0_3 = arith.constant 0 : index
    %c0_4 = arith.constant 0 : index
    %2 = memref.load %arg2[%c0_3, %c0_4] : memref<1x1xf32, #tpu.memory_space<smem>>
    %c0_5 = arith.constant 0 : index
    %c0_6 = arith.constant 0 : index
    %3 = vector.load %arg4[%c0_5, %c0_6] : memref<128x128xf32, #tpu.memory_space<vmem>>, vector<128x128xf32>
    %cst = arith.constant dense<0.000000e+00> : vector<8x128xf32>
    %4 = tpu.matmul %0, %3, %cst {dimension_numbers = #tpu.dot_dimension_numbers<[1], [0], [0], [1], [0, 0, 1, 1], [], []>} : vector<8x128xf32>, vector<128x128xf32>, vector<8x128xf32> -> vector<8x128xf32>
    %c0_7 = arith.constant 0 : index
    %c0_8 = arith.constant 0 : index
    %5 = vector.load %arg5[%c0_7, %c0_8] : memref<1x128xf32, #tpu.memory_space<vmem>>, vector<1x128xf32>
    %6 = vector.broadcast %5 : vector<1x128xf32> to vector<8x128xf32>
    %7 = arith.addf %4, %6 : vector<8x128xf32>
    %cst_9 = arith.constant 0.000000e+00 : f32
    %8 = vector.broadcast %cst_9 : f32 to vector<8x128xf32>
    %9 = arith.cmpf ogt, %7, %8 : vector<8x128xf32>
    %10 = vector.broadcast %1 : f32 to vector<8x128xf32>
    %11 = arith.mulf %10, %7 : vector<8x128xf32>
    %12 = arith.select %9, %7, %11 : vector<8x128xi1>, vector<8x128xf32>
    %c0_10 = arith.constant 0 : index
    %c0_11 = arith.constant 0 : index
    %13 = vector.load %arg6[%c0_10, %c0_11] : memref<128x128xf32, #tpu.memory_space<vmem>>, vector<128x128xf32>
    %cst_12 = arith.constant dense<0.000000e+00> : vector<8x128xf32>
    %14 = tpu.matmul %12, %13, %cst_12 {dimension_numbers = #tpu.dot_dimension_numbers<[1], [0], [0], [1], [0, 0, 1, 1], [], []>} : vector<8x128xf32>, vector<128x128xf32>, vector<8x128xf32> -> vector<8x128xf32>
    %c0_13 = arith.constant 0 : index
    %c0_14 = arith.constant 0 : index
    %15 = vector.load %arg7[%c0_13, %c0_14] : memref<1x128xf32, #tpu.memory_space<vmem>>, vector<1x128xf32>
    %16 = vector.broadcast %15 : vector<1x128xf32> to vector<8x128xf32>
    %17 = arith.addf %14, %16 : vector<8x128xf32>
    %cst_15 = arith.constant 0.000000e+00 : f32
    %18 = vector.broadcast %cst_15 : f32 to vector<8x128xf32>
    %19 = arith.cmpf ogt, %17, %18 : vector<8x128xf32>
    %20 = vector.broadcast %2 : f32 to vector<8x128xf32>
    %21 = arith.mulf %20, %17 : vector<8x128xf32>
    %22 = arith.select %19, %17, %21 : vector<8x128xi1>, vector<8x128xf32>
    %c0_16 = arith.constant 0 : index
    %c0_17 = arith.constant 0 : index
    %23 = vector.load %arg8[%c0_16, %c0_17] : memref<128x128xf32, #tpu.memory_space<vmem>>, vector<128x128xf32>
    %cst_18 = arith.constant dense<0.000000e+00> : vector<8x128xf32>
    %24 = tpu.matmul %22, %23, %cst_18 {dimension_numbers = #tpu.dot_dimension_numbers<[1], [0], [0], [1], [0, 0, 1, 1], [], []>} : vector<8x128xf32>, vector<128x128xf32>, vector<8x128xf32> -> vector<8x128xf32>
    %c0_19 = arith.constant 0 : index
    %c0_20 = arith.constant 0 : index
    %25 = vector.load %arg9[%c0_19, %c0_20] : memref<1x128xf32, #tpu.memory_space<vmem>>, vector<1x128xf32>
    %26 = vector.broadcast %25 : vector<1x128xf32> to vector<8x128xf32>
    %27 = arith.addf %24, %26 : vector<8x128xf32>
    %c0_21 = arith.constant 0 : index
    %c0_22 = arith.constant 0 : index
    %28 = vector.load %arg10[%c0_21, %c0_22] : memref<8x128xf32, #tpu.memory_space<vmem>>, vector<8x128xf32>
    tpu.vector_store %arg10[%c0_21, %c0_22], %27 {strides = array<i32>} : memref<8x128xf32, #tpu.memory_space<vmem>>, vector<8x128xf32>,
    return
  }
  func.func @transform_0(%arg0: i32) -> (i32, i32) {
    %c0_i32 = arith.constant 0 : i32
    %c0_i32_0 = arith.constant 0 : i32
    %c0_i32_1 = arith.constant 0 : i32
    return %c0_i32, %c0_i32_0 : i32, i32
  }
  func.func @transform_1(%arg0: i32) -> (i32, i32) {
    %c0_i32 = arith.constant 0 : i32
    %c0_i32_0 = arith.constant 0 : i32
    %c0_i32_1 = arith.constant 0 : i32
    return %c0_i32, %c0_i32_0 : i32, i32
  }
  func.func @transform_2(%arg0: i32) -> (i32, i32) {
    %c0_i32 = arith.constant 0 : i32
    %c0_i32_0 = arith.constant 0 : i32
    return %arg0, %c0_i32 : i32, i32
  }
  func.func @transform_3(%arg0: i32) -> (i32, i32) {
    %c0_i32 = arith.constant 0 : i32
    %c0_i32_0 = arith.constant 0 : i32
    %c0_i32_1 = arith.constant 0 : i32
    return %c0_i32, %c0_i32_0 : i32, i32
  }
  func.func @transform_4(%arg0: i32) -> (i32, i32) {
    %c0_i32 = arith.constant 0 : i32
    %c0_i32_0 = arith.constant 0 : i32
    %c0_i32_1 = arith.constant 0 : i32
    return %c0_i32, %c0_i32_0 : i32, i32
  }
  func.func @transform_5(%arg0: i32) -> (i32, i32) {
    %c0_i32 = arith.constant 0 : i32
    %c0_i32_0 = arith.constant 0 : i32
    %c0_i32_1 = arith.constant 0 : i32
    return %c0_i32, %c0_i32_0 : i32, i32
  }
  func.func @transform_6(%arg0: i32) -> (i32, i32) {
    %c0_i32 = arith.constant 0 : i32
    %c0_i32_0 = arith.constant 0 : i32
    %c0_i32_1 = arith.constant 0 : i32
    return %c0_i32, %c0_i32_0 : i32, i32
  }
  func.func @transform_7(%arg0: i32) -> (i32, i32) {
    %c0_i32 = arith.constant 0 : i32
    %c0_i32_0 = arith.constant 0 : i32
    %c0_i32_1 = arith.constant 0 : i32
    return %c0_i32, %c0_i32_0 : i32, i32
  }
  func.func @transform_8(%arg0: i32) -> (i32, i32) {
    %c0_i32 = arith.constant 0 : i32
    %c0_i32_0 = arith.constant 0 : i32
    %c0_i32_1 = arith.constant 0 : i32
    return %c0_i32, %c0_i32_0 : i32, i32
  }
  func.func @transform_9(%arg0: i32) -> (i32, i32) {
    %c0_i32 = arith.constant 0 : i32
    %c0_i32_0 = arith.constant 0 : i32
    return %arg0, %c0_i32 : i32, i32
  }
}

</mosaic_0001>

<llo_original>
// kernel: tpu_custom_call.1
$region0: #{tpu_custom_call.1}
  #allocation0 [shape = 'u32[]', space=smem, size = 0x4, offset = 0x4, fixed_abs, tag = 'smem constant byte address 0x4 - core index']
  #allocation1 [shape = 'u32[144,128]{1,0:T(1,128)}', space=vmem, size = 0x12000, scoped, tag = 'internal scratch']
  #allocation2 [shape = 'f32[1,1]{1,0:T(1,128)S(6)}', space=smem, size = 0x200, scoped, tag = 'scoped memory for tpu_custom_call.1']
  #allocation3 [shape = 'f32[1,1]{1,0:T(1,128)S(6)}', space=smem, size = 0x200, scoped, tag = 'scoped memory for tpu_custom_call.1']
  %s0 = inlined_call_operand.<no memory space> [shape: f32[1,1], index: 0, kind: input, shape index: {}]
  %s1 = inlined_call_operand.<no memory space> [shape: f32[1,1], index: 1, kind: input, shape index: {}]
  %s2 = inlined_call_operand.hbm [shape: f32[8,128], index: 2, kind: input, shape index: {}]
  %s3 = inlined_call_operand.hbm [shape: f32[128,128], index: 3, kind: input, shape index: {}]
  %s4 = inlined_call_operand.vmem [shape: f32[1,128], index: 4, kind: input, shape index: {}]
  %s5 = inlined_call_operand.hbm [shape: f32[128,128], index: 5, kind: input, shape index: {}]
  %s6 = inlined_call_operand.vmem [shape: f32[1,128], index: 6, kind: input, shape index: {}]
  %s7 = inlined_call_operand.hbm [shape: f32[128,128], index: 7, kind: input, shape index: {}]
  %s8 = inlined_call_operand.vmem [shape: f32[1,128], index: 8, kind: input, shape index: {}]
  %s9 = inlined_call_operand.hbm [shape: f32[8,128], index: 9, kind: output, shape index: {}]
  %s10 = sld [smem:[#allocation0]]
  $region62: #{tpu_custom_call.1} parent=0
    _
  %s12 = ssub.s32 1, %s10
  %s13 = scalar_select 0, %s12, %s10
  %14 = sst [smem:[#allocation2]] %s0
  %15 = sst [smem:[#allocation3]] %s1
  $region1: #{tpu_custom_call.1} parent=0
    #allocation4 [shape = 'u8[4096]{0}', space=vmem, size = 0x1000, scoped, tag = 'input window, operand 2, single buffered']
    #allocation5 [shape = 's32[1]{0}', space=sflag, size = 0x4, scoped, tag = 'scoped memory for tpu_custom_call.1']
    #allocation6 [shape = 's32[1]{0}', space=sflag, size = 0x4, scoped, tag = 'scoped memory for tpu_custom_call.1']
    #allocation7 [shape = 'u8[65536]{0}', space=vmem, size = 0x10000, scoped, tag = 'input window, operand 3, single buffered']
    #allocation8 [shape = 's32[1]{0}', space=sflag, size = 0x4, scoped, tag = 'scoped memory for tpu_custom_call.1']
    #allocation9 [shape = 'u8[65536]{0}', space=vmem, size = 0x10000, scoped, tag = 'input window, operand 5, single buffered']
    #allocation10 [shape = 'u8[65536]{0}', space=vmem, size = 0x10000, scoped, tag = 'input window, operand 7, single buffered']
    #allocation11 [shape = 's32[1]{0}', space=sflag, size = 0x4, scoped, tag = 'scoped memory for tpu_custom_call.1']
    #allocation12 [shape = 'u8[4096]{0}', space=vmem, size = 0x1000, scoped, tag = 'output window, operand 0, single buffered']
    %16 = vsyncpa [#allocation5], 0
    %17 = vsyncpa [#allocation8], 0
    %18 = vsyncpa [#allocation11], 0
    %19 = vsyncpa [#allocation6], 0
    // Predicated region
    $region2: #{tpu_custom_call.1} parent=1 // pred_check
      _
    $region3: #{tpu_custom_call.1} parent=1 // pred_check_branch
      %21 = sbr.rel (0) target = $region5
    $region4: #{tpu_custom_call.1} parent=1 // pred_region
      _
    $region5: #{tpu_custom_call.1} parent=1 // pred_fallthru
      _
    // Predicated region
    $region6: #{tpu_custom_call.1} parent=1 // pred_check
      _
    $region7: #{tpu_custom_call.1} parent=1 // pred_check_branch
      %23 = sbr.rel (0) target = $region9
    $region8: #{tpu_custom_call.1} parent=1 // pred_region
      _
    $region9: #{tpu_custom_call.1} parent=1 // pred_fallthru
      _
    // Predicated region
    $region10: #{tpu_custom_call.1} parent=1 // pred_check
      _
    $region11: #{tpu_custom_call.1} parent=1 // pred_check_branch
      %25 = sbr.rel (0) target = $region13
    $region12: #{tpu_custom_call.1} parent=1 // pred_region
      %s27 = ssub.s32 128, 128
      %28 = vsyncadd [#allocation5], %s27
      %s30 = sshll.u32 [#allocation4], 4
      %s31 = int_to_ptr.vmem [resolvable:$true] %s30
      %33 = dma.hbm_to_vmem [thread:$0]  %s2, 128, %s31, [#allocation5]
    $region13: #{tpu_custom_call.1} parent=1 // pred_fallthru
      _
    // Predicated region
    $region14: #{tpu_custom_call.1} parent=1 // pred_check
      _
    $region15: #{tpu_custom_call.1} parent=1 // pred_check_branch
      %35 = sbr.rel (0) target = $region17
    $region16: #{tpu_custom_call.1} parent=1 // pred_region
      %s37 = ssub.s32 2048, 2048
      %38 = vsyncadd [#allocation8], %s37
      %s39 = sshll.u32 [#allocation7], 4
      %s40 = int_to_ptr.vmem [resolvable:$true] %s39
      %45 = dma.hbm_to_vmem [thread:$0]  %s3, 2048, %s40, [#allocation8], 128, 128, 8
    $region17: #{tpu_custom_call.1} parent=1 // pred_fallthru
      _
    // Predicated region
    $region18: #{tpu_custom_call.1} parent=1 // pred_check
      _
    $region19: #{tpu_custom_call.1} parent=1 // pred_check_branch
      %47 = sbr.rel (0) target = $region21
    $region20: #{tpu_custom_call.1} parent=1 // pred_region
      _
    $region21: #{tpu_custom_call.1} parent=1 // pred_fallthru
      _
    // Predicated region
    $region22: #{tpu_custom_call.1} parent=1 // pred_check
      _
    $region23: #{tpu_custom_call.1} parent=1 // pred_check_branch
      %49 = sbr.rel (0) target = $region25
    $region24: #{tpu_custom_call.1} parent=1 // pred_region
      %s51 = ssub.s32 2048, 2048
      %52 = vsyncadd [#allocation8], %s51
      %s53 = sshll.u32 [#allocation9], 4
      %s54 = int_to_ptr.vmem [resolvable:$true] %s53
      %59 = dma.hbm_to_vmem [thread:$0]  %s5, 2048, %s54, [#allocation8], 128, 128, 8
    $region25: #{tpu_custom_call.1} parent=1 // pred_fallthru
      _
    // Predicated region
    $region26: #{tpu_custom_call.1} parent=1 // pred_check
      _
    $region27: #{tpu_custom_call.1} parent=1 // pred_check_branch
      %61 = sbr.rel (0) target = $region29
    $region28: #{tpu_custom_call.1} parent=1 // pred_region
      _
    $region29: #{tpu_custom_call.1} parent=1 // pred_fallthru
      _
    // Predicated region
    $region30: #{tpu_custom_call.1} parent=1 // pred_check
      _
    $region31: #{tpu_custom_call.1} parent=1 // pred_check_branch
      %63 = sbr.rel (0) target = $region33
    $region32: #{tpu_custom_call.1} parent=1 // pred_region
      %s65 = ssub.s32 2048, 2048
      %66 = vsyncadd [#allocation11], %s65
      %s67 = sshll.u32 [#allocation10], 4
      %s68 = int_to_ptr.vmem [resolvable:$true] %s67
      %73 = dma.hbm_to_vmem [thread:$0]  %s7, 2048, %s68, [#allocation11], 128, 128, 8
    $region33: #{tpu_custom_call.1} parent=1 // pred_fallthru
      _
    // Predicated region
    $region34: #{tpu_custom_call.1} parent=1 // pred_check
      _
    $region35: #{tpu_custom_call.1} parent=1 // pred_check_branch
      %75 = sbr.rel (0) target = $region37
    $region36: #{tpu_custom_call.1} parent=1 // pred_region
      _
    $region37: #{tpu_custom_call.1} parent=1 // pred_fallthru
      _
    // Predicated region
    $region38: #{tpu_custom_call.1} parent=1 // pred_check
      _
    $region39: #{tpu_custom_call.1} parent=1 // pred_check_branch
      %77 = sbr.rel (0) target = $region41
    $region40: #{tpu_custom_call.1} parent=1 // pred_region
      %78 = dma.done [#allocation5], 128
    $region41: #{tpu_custom_call.1} parent=1 // pred_fallthru
      _
    // Predicated region
    $region42: #{tpu_custom_call.1} parent=1 // pred_check
      _
    $region43: #{tpu_custom_call.1} parent=1 // pred_check_branch
      %80 = sbr.rel (0) target = $region45
    $region44: #{tpu_custom_call.1} parent=1 // pred_region
      %81 = dma.done [#allocation8], 2048
    $region45: #{tpu_custom_call.1} parent=1 // pred_fallthru
      _
    // Predicated region
    $region46: #{tpu_custom_call.1} parent=1 // pred_check
      _
    $region47: #{tpu_custom_call.1} parent=1 // pred_check_branch
      %83 = sbr.rel (0) target = $region49
    $region48: #{tpu_custom_call.1} parent=1 // pred_region
      %84 = dma.done [#allocation8], 2048
    $region49: #{tpu_custom_call.1} parent=1 // pred_fallthru
      _
    // Predicated region
    $region50: #{tpu_custom_call.1} parent=1 // pred_check
      _
    $region51: #{tpu_custom_call.1} parent=1 // pred_check_branch
      %86 = sbr.rel (0) target = $region53
    $region52: #{tpu_custom_call.1} parent=1 // pred_region
      %87 = dma.done [#allocation11], 2048
    $region53: #{tpu_custom_call.1} parent=1 // pred_fallthru
      _
    %v88 = vld [vmem:[#allocation4] sm:$0xff]
    %s89 = sld [smem:[#allocation2]]
    %s90 = sld [smem:[#allocation3]]
    %v91 = vld [vmem:[#allocation7] sm:$0xff]
    %v92 = vld [vmem:[#allocation7 + $0x8] sm:$0xff]
    %v93 = vld [vmem:[#allocation7 + $0x10] sm:$0xff]
    %v94 = vld [vmem:[#allocation7 + $0x18] sm:$0xff]
    %v95 = vld [vmem:[#allocation7 + $0x20] sm:$0xff]
    %v96 = vld [vmem:[#allocation7 + $0x28] sm:$0xff]
    %v97 = vld [vmem:[#allocation7 + $0x30] sm:$0xff]
    %v98 = vld [vmem:[#allocation7 + $0x38] sm:$0xff]
    %v99 = vld [vmem:[#allocation7 + $0x40] sm:$0xff]
    %v100 = vld [vmem:[#allocation7 + $0x48] sm:$0xff]
    %v101 = vld [vmem:[#allocation7 + $0x50] sm:$0xff]
    %v102 = vld [vmem:[#allocation7 + $0x58] sm:$0xff]
    %v103 = vld [vmem:[#allocation7 + $0x60] sm:$0xff]
    %v104 = vld [vmem:[#allocation7 + $0x68] sm:$0xff]
    %v105 = vld [vmem:[#allocation7 + $0x70] sm:$0xff]
    %v106 = vld [vmem:[#allocation7 + $0x78] sm:$0xff]
    %v107 = vld [vmem:[%s4] sm:$0x1]
    %v109 = vlaneseq
    %v110 = vshrl.u32 %v109, 7
    %v111 = vsub.s32 0, %v110
    %v112 = vrot.slane %v107, %v111
    %114 = vmatprep.subr.mxu0 0.0
    %115 = vmatpush1.msra.mxu0 %v106
    %116 = vmatprep.subr.mxu0 0.0
    %117 = vmatpush1.msra.mxu0 %v105
    %118 = vmatprep.subr.mxu0 0.0
    %119 = vmatpush1.msra.mxu0 %v104
    %120 = vmatprep.subr.mxu0 0.0
    %121 = vmatpush1.msra.mxu0 %v103
    %122 = vmatprep.subr.mxu0 0.0
    %123 = vmatpush1.msra.mxu0 %v102
    %124 = vmatprep.subr.mxu0 0.0
    %125 = vmatpush1.msra.mxu0 %v101
    %126 = vmatprep.subr.mxu0 0.0
    %127 = vmatpush1.msra.mxu0 %v100
    %128 = vmatprep.subr.mxu0 0.0
    %129 = vmatpush1.msra.mxu0 %v99
    %130 = vmatprep.subr.mxu0 0.0
    %131 = vmatpush1.msra.mxu0 %v98
    %132 = vmatprep.subr.mxu0 0.0
    %133 = vmatpush1.msra.mxu0 %v97
    %134 = vmatprep.subr.mxu0 0.0
    %135 = vmatpush1.msra.mxu0 %v96
    %136 = vmatprep.subr.mxu0 0.0
    %137 = vmatpush1.msra.mxu0 %v95
    %138 = vmatprep.subr.mxu0 0.0
    %139 = vmatpush1.msra.mxu0 %v94
    %140 = vmatprep.subr.mxu0 0.0
    %141 = vmatpush1.msra.mxu0 %v93
    %142 = vmatprep.subr.mxu0 0.0
    %143 = vmatpush1.msra.mxu0 %v92
    %144 = vmatprep.subr.mxu0 0.0
    %145 = vmatpush1.msra.mxu0 %v91
    %146 = vmatprep.subr.mxu0 0.0
    %147 = vmatpush2.msra.mxu0 0.0
    %148 = vmatprep.subr.mxu0 0.0
    %149 = vmatpush2.msra.mxu0 0.0
    %150 = vmatprep.subr.mxu0 0.0
    %151 = vmatpush2.msra.mxu0 0.0
    %152 = vmatprep.subr.mxu0 0.0
    %153 = vmatpush2.msra.mxu0 0.0
    %154 = vmatprep.subr.mxu0 0.0
    %155 = vmatpush2.msra.mxu0 0.0
    %156 = vmatprep.subr.mxu0 0.0
    %157 = vmatpush2.msra.mxu0 0.0
    %158 = vmatprep.subr.mxu0 0.0
    %159 = vmatpush2.msra.mxu0 0.0
    %160 = vmatprep.subr.mxu0 0.0
    %161 = vmatpush2.msra.mxu0 0.0
    %162 = vmatprep.subr.mxu0 0.0
    %163 = vmatpush2.msra.mxu0 0.0
    %164 = vmatprep.subr.mxu0 0.0
    %165 = vmatpush2.msra.mxu0 0.0
    %166 = vmatprep.subr.mxu0 0.0
    %167 = vmatpush2.msra.mxu0 0.0
    %168 = vmatprep.subr.mxu0 0.0
    %169 = vmatpush2.msra.mxu0 0.0
    %170 = vmatprep.subr.mxu0 0.0
    %171 = vmatpush2.msra.mxu0 0.0
    %172 = vmatprep.subr.mxu0 0.0
    %173 = vmatpush2.msra.mxu0 0.0
    %174 = vmatprep.subr.mxu0 0.0
    %175 = vmatpush2.msra.mxu0 0.0
    %176 = vmatprep.subr.mxu0 0.0
    %177 = vmatpush2.msra.mxu0 0.0
    %178 = vmatprep.mubr.f32.mxu0 0.0
    %179 = vmatmul.mubr.f32.gmra.mxu0 %v88
    %v180 = vpop.f32.mrf.mxu0
    %v181 = vadd.f32 %v112, %v180
    %v182 = vpop.f32.mrf.mxu0
    %183 = vdwg.mxu0
    %vm184 = vcmp.gt.f32.partialorder %v181, 0.0
    %v185 = vstv %s89
    %v186 = vmul.f32 %v185, %v181
    %v187 = vsel %vm184, %v181, %v186
    %v188 = vld [vmem:[#allocation9] sm:$0xff]
    %v189 = vld [vmem:[#allocation9 + $0x8] sm:$0xff]
    %v190 = vld [vmem:[#allocation9 + $0x10] sm:$0xff]
    %v191 = vld [vmem:[#allocation9 + $0x18] sm:$0xff]
    %v192 = vld [vmem:[#allocation9 + $0x20] sm:$0xff]
    %v193 = vld [vmem:[#allocation9 + $0x28] sm:$0xff]
    %v194 = vld [vmem:[#allocation9 + $0x30] sm:$0xff]
    %v195 = vld [vmem:[#allocation9 + $0x38] sm:$0xff]
    %v196 = vld [vmem:[#allocation9 + $0x40] sm:$0xff]
    %v197 = vld [vmem:[#allocation9 + $0x48] sm:$0xff]
    %v198 = vld [vmem:[#allocation9 + $0x50] sm:$0xff]
    %v199 = vld [vmem:[#allocation9 + $0x58] sm:$0xff]
    %v200 = vld [vmem:[#allocation9 + $0x60] sm:$0xff]
    %v201 = vld [vmem:[#allocation9 + $0x68] sm:$0xff]
    %v202 = vld [vmem:[#allocation9 + $0x70] sm:$0xff]
    %v203 = vld [vmem:[#allocation9 + $0x78] sm:$0xff]
    %v204 = vld [vmem:[%s6] sm:$0x1]
    %v206 = vlaneseq
    %v207 = vshrl.u32 %v206, 7
    %v208 = vsub.s32 0, %v207
    %v209 = vrot.slane %v204, %v208
    %211 = vmatprep.subr.mxu0 0.0
    %212 = vmatpush1.msra.mxu0 %v203
    %213 = vmatprep.subr.mxu0 0.0
    %214 = vmatpush1.msra.mxu0 %v202
    %215 = vmatprep.subr.mxu0 0.0
    %216 = vmatpush1.msra.mxu0 %v201
    %217 = vmatprep.subr.mxu0 0.0
    %218 = vmatpush1.msra.mxu0 %v200
    %219 = vmatprep.subr.mxu0 0.0
    %220 = vmatpush1.msra.mxu0 %v199
    %221 = vmatprep.subr.mxu0 0.0
    %222 = vmatpush1.msra.mxu0 %v198
    %223 = vmatprep.subr.mxu0 0.0
    %224 = vmatpush1.msra.mxu0 %v197
    %225 = vmatprep.subr.mxu0 0.0
    %226 = vmatpush1.msra.mxu0 %v196
    %227 = vmatprep.subr.mxu0 0.0
    %228 = vmatpush1.msra.mxu0 %v195
    %229 = vmatprep.subr.mxu0 0.0
    %230 = vmatpush1.msra.mxu0 %v194
    %231 = vmatprep.subr.mxu0 0.0
    %232 = vmatpush1.msra.mxu0 %v193
    %233 = vmatprep.subr.mxu0 0.0
    %234 = vmatpush1.msra.mxu0 %v192
    %235 = vmatprep.subr.mxu0 0.0
    %236 = vmatpush1.msra.mxu0 %v191
    %237 = vmatprep.subr.mxu0 0.0
    %238 = vmatpush1.msra.mxu0 %v190
    %239 = vmatprep.subr.mxu0 0.0
    %240 = vmatpush1.msra.mxu0 %v189
    %241 = vmatprep.subr.mxu0 0.0
    %242 = vmatpush1.msra.mxu0 %v188
    %243 = vmatprep.subr.mxu0 0.0
    %244 = vmatpush2.msra.mxu0 0.0
    %245 = vmatprep.subr.mxu0 0.0
    %246 = vmatpush2.msra.mxu0 0.0
    %247 = vmatprep.subr.mxu0 0.0
    %248 = vmatpush2.msra.mxu0 0.0
    %249 = vmatprep.subr.mxu0 0.0
    %250 = vmatpush2.msra.mxu0 0.0
    %251 = vmatprep.subr.mxu0 0.0
    %252 = vmatpush2.msra.mxu0 0.0
    %253 = vmatprep.subr.mxu0 0.0
    %254 = vmatpush2.msra.mxu0 0.0
    %255 = vmatprep.subr.mxu0 0.0
    %256 = vmatpush2.msra.mxu0 0.0
    %257 = vmatprep.subr.mxu0 0.0
    %258 = vmatpush2.msra.mxu0 0.0
    %259 = vmatprep.subr.mxu0 0.0
    %260 = vmatpush2.msra.mxu0 0.0
    %261 = vmatprep.subr.mxu0 0.0
    %262 = vmatpush2.msra.mxu0 0.0
    %263 = vmatprep.subr.mxu0 0.0
    %264 = vmatpush2.msra.mxu0 0.0
    %265 = vmatprep.subr.mxu0 0.0
    %266 = vmatpush2.msra.mxu0 0.0
    %267 = vmatprep.subr.mxu0 0.0
    %268 = vmatpush2.msra.mxu0 0.0
    %269 = vmatprep.subr.mxu0 0.0
    %270 = vmatpush2.msra.mxu0 0.0
    %271 = vmatprep.subr.mxu0 0.0
    %272 = vmatpush2.msra.mxu0 0.0
    %273 = vmatprep.subr.mxu0 0.0
    %274 = vmatpush2.msra.mxu0 0.0
    %275 = vmatprep.mubr.f32.mxu0 0.0
    %276 = vmatmul.mubr.f32.gmra.mxu0 %v187
    %v277 = vpop.f32.mrf.mxu0
    %v278 = vadd.f32 %v209, %v277
    %v279 = vpop.f32.mrf.mxu0
    %280 = vdwg.mxu0
    %vm281 = vcmp.gt.f32.partialorder %v278, 0.0
    %v282 = vstv %s90
    %v283 = vmul.f32 %v282, %v278
    %v284 = vsel %vm281, %v278, %v283
    %v285 = vld [vmem:[#allocation10] sm:$0xff]
    %v286 = vld [vmem:[#allocation10 + $0x8] sm:$0xff]
    %v287 = vld [vmem:[#allocation10 + $0x10] sm:$0xff]
    %v288 = vld [vmem:[#allocation10 + $0x18] sm:$0xff]
    %v289 = vld [vmem:[#allocation10 + $0x20] sm:$0xff]
    %v290 = vld [vmem:[#allocation10 + $0x28] sm:$0xff]
    %v291 = vld [vmem:[#allocation10 + $0x30] sm:$0xff]
    %v292 = vld [vmem:[#allocation10 + $0x38] sm:$0xff]
    %v293 = vld [vmem:[#allocation10 + $0x40] sm:$0xff]
    %v294 = vld [vmem:[#allocation10 + $0x48] sm:$0xff]
    %v295 = vld [vmem:[#allocation10 + $0x50] sm:$0xff]
    %v296 = vld [vmem:[#allocation10 + $0x58] sm:$0xff]
    %v297 = vld [vmem:[#allocation10 + $0x60] sm:$0xff]
    %v298 = vld [vmem:[#allocation10 + $0x68] sm:$0xff]
    %v299 = vld [vmem:[#allocation10 + $0x70] sm:$0xff]
    %v300 = vld [vmem:[#allocation10 + $0x78] sm:$0xff]
    %v301 = vld [vmem:[%s8] sm:$0x1]
    %v303 = vlaneseq
    %v304 = vshrl.u32 %v303, 7
    %v305 = vsub.s32 0, %v304
    %v306 = vrot.slane %v301, %v305
    %308 = vmatprep.subr.mxu0 0.0
    %309 = vmatpush1.msra.mxu0 %v300
    %310 = vmatprep.subr.mxu0 0.0
    %311 = vmatpush1.msra.mxu0 %v299
    %312 = vmatprep.subr.mxu0 0.0
    %313 = vmatpush1.msra.mxu0 %v298
    %314 = vmatprep.subr.mxu0 0.0
    %315 = vmatpush1.msra.mxu0 %v297
    %316 = vmatprep.subr.mxu0 0.0
    %317 = vmatpush1.msra.mxu0 %v296
    %318 = vmatprep.subr.mxu0 0.0
    %319 = vmatpush1.msra.mxu0 %v295
    %320 = vmatprep.subr.mxu0 0.0
    %321 = vmatpush1.msra.mxu0 %v294
    %322 = vmatprep.subr.mxu0 0.0
    %323 = vmatpush1.msra.mxu0 %v293
    %324 = vmatprep.subr.mxu0 0.0
    %325 = vmatpush1.msra.mxu0 %v292
    %326 = vmatprep.subr.mxu0 0.0
    %327 = vmatpush1.msra.mxu0 %v291
    %328 = vmatprep.subr.mxu0 0.0
    %329 = vmatpush1.msra.mxu0 %v290
    %330 = vmatprep.subr.mxu0 0.0
    %331 = vmatpush1.msra.mxu0 %v289
    %332 = vmatprep.subr.mxu0 0.0
    %333 = vmatpush1.msra.mxu0 %v288
    %334 = vmatprep.subr.mxu0 0.0
    %335 = vmatpush1.msra.mxu0 %v287
    %336 = vmatprep.subr.mxu0 0.0
    %337 = vmatpush1.msra.mxu0 %v286
    %338 = vmatprep.subr.mxu0 0.0
    %339 = vmatpush1.msra.mxu0 %v285
    %340 = vmatprep.subr.mxu0 0.0
    %341 = vmatpush2.msra.mxu0 0.0
    %342 = vmatprep.subr.mxu0 0.0
    %343 = vmatpush2.msra.mxu0 0.0
    %344 = vmatprep.subr.mxu0 0.0
    %345 = vmatpush2.msra.mxu0 0.0
    %346 = vmatprep.subr.mxu0 0.0
    %347 = vmatpush2.msra.mxu0 0.0
    %348 = vmatprep.subr.mxu0 0.0
    %349 = vmatpush2.msra.mxu0 0.0
    %350 = vmatprep.subr.mxu0 0.0
    %351 = vmatpush2.msra.mxu0 0.0
    %352 = vmatprep.subr.mxu0 0.0
    %353 = vmatpush2.msra.mxu0 0.0
    %354 = vmatprep.subr.mxu0 0.0
    %355 = vmatpush2.msra.mxu0 0.0
    %356 = vmatprep.subr.mxu0 0.0
    %357 = vmatpush2.msra.mxu0 0.0
    %358 = vmatprep.subr.mxu0 0.0
    %359 = vmatpush2.msra.mxu0 0.0
    %360 = vmatprep.subr.mxu0 0.0
    %361 = vmatpush2.msra.mxu0 0.0
    %362 = vmatprep.subr.mxu0 0.0
    %363 = vmatpush2.msra.mxu0 0.0
    %364 = vmatprep.subr.mxu0 0.0
    %365 = vmatpush2.msra.mxu0 0.0
    %366 = vmatprep.subr.mxu0 0.0
    %367 = vmatpush2.msra.mxu0 0.0
    %368 = vmatprep.subr.mxu0 0.0
    %369 = vmatpush2.msra.mxu0 0.0
    %370 = vmatprep.subr.mxu0 0.0
    %371 = vmatpush2.msra.mxu0 0.0
    %372 = vmatprep.mubr.f32.mxu0 0.0
    %373 = vmatmul.mubr.f32.gmra.mxu0 %v284
    %v374 = vpop.f32.mrf.mxu0
    %v375 = vadd.f32 %v306, %v374
    %v376 = vpop.f32.mrf.mxu0
    %377 = vdwg.mxu0
    %378 = vst [vmem:[#allocation12] sm:$0xff] %v375
    // Predicated region
    $region54: #{tpu_custom_call.1} parent=1 // pred_check
      _
    $region55: #{tpu_custom_call.1} parent=1 // pred_check_branch
      %380 = sbr.rel (0) target = $region57
    $region56: #{tpu_custom_call.1} parent=1 // pred_region
      %s382 = ssub.s32 128, 128
      %383 = vsyncadd [#allocation6], %s382
      %s385 = sshll.u32 [#allocation12], 4
      %s386 = int_to_ptr.vmem [resolvable:$true] %s385
      %388 = dma.vmem_to_hbm [thread:$0]  %s386, 128, %s9, [#allocation6]
    $region57: #{tpu_custom_call.1} parent=1 // pred_fallthru
      _
    // Predicated region
    $region58: #{tpu_custom_call.1} parent=1 // pred_check
      _
    $region59: #{tpu_custom_call.1} parent=1 // pred_check_branch
      %390 = sbr.rel (0) target = $region61
    $region60: #{tpu_custom_call.1} parent=1 // pred_region
      %391 = dma.done [#allocation6], 128
    $region61: #{tpu_custom_call.1} parent=1 // pred_fallthru
      _
    %392 = vsyncpa [#allocation5], 1
    %393 = vsyncpa [#allocation8], 1
    %394 = vsyncpa [#allocation11], 1
    %395 = vsyncpa [#allocation6], 1

</llo_original>
